<compile_context>
chip_gen: v7x
topology: tpu7x:2x2x1
jax: 0.10.0
libtpu: 0.0.40
codegen_flags: <defaults>
</compile_context>

<pallas_src>
import functools

import jax
import jax.numpy as jnp
from jax import lax
from jax.experimental import pallas as pl
from jax.experimental.pallas import tpu as pltpu


# ---------------------------------------------------------------------------
# Kernel 1: 3x3 convolution (stride 1, pad 1) as ONE tap-fused MXU matmul.
#
#   Input is the zero-padded image flattened over (H+3, W+2) so that the tap
#   at (ky, kx) for output position p is simply x_flat[p + ky*(W+2) + kx]:
#   every tap is a contiguous, static lane slice of the VMEM block.  The taps
#   are written into a (9*Cin, Lout) scratch and contracted against the packed
#   weights (Cout, 9*Cin) in a single bf16 matmul with f32 accumulation.
#   The output is lane-dense: (Cout, Lout) with Lout = H*(W+2) on the lanes.
#
#   When `fuse_residual` is set (last DBN layer) the kernel also emits
#   output1 = clamp(f15 + ref, 0, 1), removing the separate add/clamp kernel
#   and its extra HBM round trip.
# ---------------------------------------------------------------------------
def _conv3x3_kernel(*refs, cin, wp, relu, fuse_residual):
    if fuse_residual:
        x_ref, w_ref, b_ref, r_ref, o_ref, o2_ref, taps_ref = refs
    else:
        x_ref, w_ref, b_ref, o_ref, taps_ref = refs
        r_ref = o2_ref = None

    lout = taps_ref.shape[-1]
    # Build the 9-tap im2col matrix in VMEM (no HBM-side im2col): tap (ky,kx)
    # is the flattened padded image at a static lane offset ky*Wp + kx.
    # Scratch is f32 so the 9 sublane-offset stores need no packing alignment.
    for k in range(9):
        ky, kx = k // 3, k % 3
        off = ky * wp + kx                                    # static offset
        taps_ref[pl.ds(k * cin, cin), :] = (
            x_ref[0, :, pl.ds(off, lout)].astype(jnp.float32))

    # Single fused matmul: (Cout, 9*Cin) @ (9*Cin, Lout), bf16 operands,
    # f32 accumulation, lane axis = flattened spatial positions.
    acc = jnp.dot(w_ref[...], taps_ref[...].astype(jnp.bfloat16),
                  preferred_element_type=jnp.float32)
    acc = acc + b_ref[...]                  # (Cout, 1) broadcasts over lanes
    if relu:
        acc = jnp.maximum(acc, 0.0)
    o_ref[0] = acc
    if fuse_residual:
        # Fused FlowDBN head epilogue (eval mode): clamp(f15 + ref, 0, 1).
        o2_ref[0] = jnp.clip(acc + r_ref[0], 0.0, 1.0)


def conv3x3(x, params, *, relu, residual=None):
    """3x3 conv, stride 1, pad 1.

    x: (B, Cin, H, W) f32.  params['w']: (Cout, 9*Cin) packed as
    [tap(ky,kx), ci];  params['b']: (Cout,).
    Returns (B, Cout, H, W); if `residual` is given additionally returns
    clamp(conv_out + residual, 0, 1).
    """
    B, Cin, H, W = x.shape
    Cout = params["w"].shape[0]
    Wp = W + 2                     # width incl. conv halo
    Lp = (H + 3) * Wp              # H padded by (1, 2): the extra bottom row
                                   # keeps every tap slice of length Lout in
                                   # bounds of the flattened block.
    Lout = H * Wp                  # lane-dense flattened output; the last two
                                   # columns of each row are junk, cropped below

    # bf16 operands halve HBM traffic for this bandwidth-bound conv; all
    # elementwise math (bias, relu, clamp) stays f32 (v5e has no bf16 VPU).
    xflat = jnp.pad(x, ((0, 0), (0, 0), (1, 2), (1, 1)))
    xflat = xflat.reshape(B, Cin, Lp).astype(jnp.bfloat16)
    wk = params["w"].astype(jnp.bfloat16)                     # (Cout, 9*Cin)
    bk = params["b"].reshape(Cout, 1).astype(jnp.float32)

    ins = [xflat, wk, bk]
    in_specs = [
        pl.BlockSpec((1, Cin, Lp), lambda i: (i, 0, 0)),
        pl.BlockSpec((Cout, 9 * Cin), lambda i: (0, 0)),
        pl.BlockSpec((Cout, 1), lambda i: (0, 0)),
    ]
    out_shape = [jax.ShapeDtypeStruct((B, Cout, Lout), jnp.float32)]
    out_specs = [pl.BlockSpec((1, Cout, Lout), lambda i: (i, 0, 0))]

    if residual is not None:
        rflat = jnp.pad(residual, ((0, 0), (0, 0), (0, 0), (0, 2)))
        rflat = rflat.reshape(B, Cout, Lout).astype(jnp.float32)
        ins.append(rflat)
        in_specs.append(pl.BlockSpec((1, Cout, Lout), lambda i: (i, 0, 0)))
        out_shape.append(jax.ShapeDtypeStruct((B, Cout, Lout), jnp.float32))
        out_specs.append(pl.BlockSpec((1, Cout, Lout), lambda i: (i, 0, 0)))

    # TODO(synk): at large H*W, add a spatial (row-tile) grid axis with a
    # haloed manual DMA so per-step VMEM stays within v7x's 64 MiB; whole-image
    # blocks are fine at these sizes.
    outs = pl.pallas_call(
        functools.partial(_conv3x3_kernel, cin=Cin, wp=Wp, relu=relu,
                          fuse_residual=residual is not None),
        grid=(B,),
        in_specs=in_specs,
        out_specs=tuple(out_specs) if residual is not None else out_specs[0],
        out_shape=tuple(out_shape) if residual is not None else out_shape[0],
        scratch_shapes=[pltpu.VMEM((9 * Cin, Lout), jnp.float32)],
        compiler_params=pltpu.CompilerParams(dimension_semantics=("parallel",)),
    )(*ins)

    def _crop(o):
        return o.reshape(B, Cout, H, Wp)[:, :, :, :W]

    if residual is None:
        return _crop(outs)
    return _crop(outs[0]), _crop(outs[1])


# ---------------------------------------------------------------------------
# Kernel 2a: bilinear-warp index/weight computation (== _WarpLayer coordinate
# math for grid_sample(mode='bilinear', padding_mode='border',
# align_corners=False)).  The pixel meshgrid is generated in-kernel via iota.
# Outputs: 4 neighbour flat indices (int32) and 4 bilinear weights per pixel.
# ---------------------------------------------------------------------------
def _warp_prep_kernel(flow_ref, idx_ref, wts_ref, *, H, W):
    xx = lax.broadcasted_iota(jnp.int32, (H, W), 1).astype(jnp.float32)
    yy = lax.broadcasted_iota(jnp.int32, (H, W), 0).astype(jnp.float32)
    vx = xx + flow_ref[0, 0]
    vy = yy + flow_ref[0, 1]
    # _WarpLayer normalization ...
    gx = 2.0 * vx / float(max(W - 1, 1)) - 1.0
    gy = 2.0 * vy / float(max(H - 1, 1)) - 1.0
    # ... then un-normalize per grid_sample(align_corners=False)
    ix = ((gx + 1.0) * W - 1.0) * 0.5
    iy = ((gy + 1.0) * H - 1.0) * 0.5
    # padding_mode='border': clip coordinates before interpolation
    ix = jnp.clip(ix, 0.0, float(W - 1))
    iy = jnp.clip(iy, 0.0, float(H - 1))

    x0f = jnp.floor(ix)
    y0f = jnp.floor(iy)
    wx1 = ix - x0f
    wx0 = 1.0 - wx1
    wy1 = iy - y0f
    wy0 = 1.0 - wy1
    x0 = x0f.astype(jnp.int32)
    y0 = y0f.astype(jnp.int32)
    x1 = jnp.minimum(x0 + 1, W - 1)
    y1 = jnp.minimum(y0 + 1, H - 1)

    idx_ref[0, 0] = y0 * W + x0
    idx_ref[0, 1] = y0 * W + x1
    idx_ref[0, 2] = y1 * W + x0
    idx_ref[0, 3] = y1 * W + x1
    wts_ref[0, 0] = wy0 * wx0
    wts_ref[0, 1] = wy0 * wx1
    wts_ref[0, 2] = wy1 * wx0
    wts_ref[0, 3] = wy1 * wx1


# ---------------------------------------------------------------------------
# Kernel 2b: lane-dense 4-tap blend of the gathered neighbours.
#   g: (1, 4, C, HW)   w: (1, 4, HW)  ->  out: (1, C, HW)
# ---------------------------------------------------------------------------
def _warp_blend_kernel(g_ref, w_ref, o_ref):
    w = w_ref[0]                                   # (4, HW)
    acc = g_ref[0, 0] * w[0:1, :]
    for k in range(1, 4):
        acc = acc + g_ref[0, k] * w[k:k + 1, :]
    o_ref[0] = acc


def warp_bilinear(img, flow):
    """img: (B, C, H, W), flow: (B, 2, H, W) with channel 0 = dx, 1 = dy."""
    B, C, H, W = img.shape
    HW = H * W

    idx, wts = pl.pallas_call(
        functools.partial(_warp_prep_kernel, H=H, W=W),
        grid=(B,),
        in_specs=[pl.BlockSpec((1, 2, H, W), lambda i: (i, 0, 0, 0))],
        out_specs=(pl.BlockSpec((1, 4, H, W), lambda i: (i, 0, 0, 0)),
                   pl.BlockSpec((1, 4, H, W), lambda i: (i, 0, 0, 0))),
        out_shape=(jax.ShapeDtypeStruct((B, 4, H, W), jnp.int32),
                   jax.ShapeDtypeStruct((B, 4, H, W), jnp.float32)),
        compiler_params=pltpu.CompilerParams(dimension_semantics=("parallel",)),
    )(flow)

    # glue: the data-dependent 4-neighbour gather runs as one vectorized XLA
    # take_along_axis -- O(HW*C), no (HW,HW) one-hot matrix, no HW^2 matmul.
    # TODO(synk): move this gather in-kernel (manual DMA / dynamic gather)
    # once a robust Mosaic path exists for arbitrary flat indices.
    img_flat = img.reshape(B, 1, C, HW)
    idx_flat = idx.reshape(B, 4, 1, HW)
    gathered = jnp.take_along_axis(
        jnp.broadcast_to(img_flat, (B, 4, C, HW)),
        jnp.broadcast_to(idx_flat, (B, 4, C, HW)),
        axis=3)

    out = pl.pallas_call(
        _warp_blend_kernel,
        grid=(B,),
        in_specs=[pl.BlockSpec((1, 4, C, HW), lambda i: (i, 0, 0, 0)),
                  pl.BlockSpec((1, 4, HW), lambda i: (i, 0, 0))],
        out_specs=pl.BlockSpec((1, C, HW), lambda i: (i, 0, 0)),
        out_shape=jax.ShapeDtypeStruct((B, C, HW), jnp.float32),
        compiler_params=pltpu.CompilerParams(dimension_semantics=("parallel",)),
    )(gathered, wts.reshape(B, 4, HW))

    return out.reshape(B, C, H, W)


# ---------------------------------------------------------------------------
# Parameters (deterministic synthetic init; conv weights stored tap-packed as
# (Cout, 9*Cin), matching the in-kernel tap order k = ky*3 + kx).
# ---------------------------------------------------------------------------
def _init_conv(key, cin, cout, scale):
    w = scale * jax.random.normal(key, (cout, 9 * cin), jnp.float32)
    b = jnp.zeros((cout,), jnp.float32)
    return {"w": w, "b": b}


def init_params(key, sequence_length):
    ks = jax.random.split(key, 6)
    flow = [_init_conv(ks[0], 6, 8, 0.1),
            _init_conv(ks[1], 8, 8, 0.1),
            _init_conv(ks[2], 8, 2, 0.05)]
    dbn_cin = (2 * sequence_length - 1) * 3
    dbn = [_init_conv(ks[3], dbn_cin, 16, 0.1),
           _init_conv(ks[4], 16, 16, 0.1),
           _init_conv(ks[5], 16, 3, 0.05)]
    return {"flow": flow, "dbn": dbn}


def _conv_stack(x, layers, residual=None):
    for p in layers[:-1]:
        x = conv3x3(x, p, relu=True)
    return conv3x3(x, layers[-1], relu=False, residual=residual)


# ---------------------------------------------------------------------------
# FlowDBN forward (eval mode)
# ---------------------------------------------------------------------------
def flowdbn_forward(input_dict, params):
    input_keys = sorted([k for k in input_dict.keys() if "input" in k])
    inputs = [input_dict[k] for k in input_keys]                 # NCHW f32
    n = len(inputs)
    refidx = n // 2
    ref = inputs[refidx]

    # ---- WarpingNetwork: flow(ref -> frame) for every non-reference frame --
    x1 = jnp.concatenate([ref for i in range(n) if i != refidx], axis=0)
    x2 = jnp.concatenate([inputs[i] for i in range(n) if i != refidx], axis=0)
    flow = _conv_stack(jnp.concatenate([x1, x2], axis=1), params["flow"])
    warped_x2 = warp_bilinear(x2, flow)
    warped = jnp.split(warped_x2, n - 1, axis=0)                 # torch.chunk

    # ---- DBN on [original frames, warped frames] -> residual 'f15'; the last
    #      conv layer fuses output1 = clamp(f15 + ref, 0, 1) in its epilogue --
    dbn_in = jnp.concatenate(inputs + warped, axis=1)            # (B,(2n-1)*3,H,W)
    f15, output1 = _conv_stack(dbn_in, params["dbn"], residual=ref)

    out = {"f15": f15, "output1": output1}
    reference_index = len(warped) // 2        # matches torch FlowDBNImpl naming
    names = ["warped{}".format(i + 1)
             for i in range(n) if i != reference_index]
    for name, w in zip(names, warped):
        out[name] = w
    return out


if __name__ == "__main__":
    key = jax.random.PRNGKey(0)
    k_in, k_par = jax.random.split(key)

    B, H, W = 2, 16, 16
    sequence_length = 3                        # -> DBN input channels = 15
    keys = jax.random.split(k_in, sequence_length)
    input_dict = {
        "input{}".format(i + 1):
            jax.random.uniform(keys[i], (B, 3, H, W), jnp.float32)
        for i in range(sequence_length)
    }
    params = init_params(k_par, sequence_length)

    out = flowdbn_forward(input_dict, params)
    jax.block_until_ready(out)
    assert out["output1"].shape == (B, 3, H, W)
    assert out["f15"].shape == (B, 3, H, W)
    assert out["warped1"].shape == (B, 3, H, W)
    assert out["warped3"].shape == (B, 3, H, W)
    print("KERNEL_OK")
</pallas_src>

<mosaic_0001>
module attributes {stable_mosaic.version = 11 : i64} {
  func.func @_conv3x3_kernel(%arg0: i32, %arg1: memref<1x6x342xbf16, #tpu.memory_space<vmem>>, %arg2: memref<8x54xbf16, #tpu.memory_space<vmem>>, %arg3: memref<8x1xf32, #tpu.memory_space<vmem>>, %arg4: memref<1x8x288xf32, #tpu.memory_space<vmem>>, %arg5: memref<54x288xf32, #tpu.memory_space<vmem>>) attributes {dimension_semantics = [#tpu.dimension_semantics<parallel>], iteration_bounds = array<i64: 4>, scalar_prefetch = 0 : i64, scratch_operands = 1 : i64, tpu.core_type = #tpu.core_type<tc>, window_params = [{transform_indices = @transform_0, window_bounds = array<i64: 1, 6, 342>}, {pipeline_mode = #tpu.pipeline_mode<synchronous>, transform_indices = @transform_1, window_bounds = array<i64: 8, 54>}, {pipeline_mode = #tpu.pipeline_mode<synchronous>, transform_indices = @transform_2, window_bounds = array<i64: 8, 1>}, {transform_indices = @transform_3, window_bounds = array<i64: 1, 8, 288>}]} {
    %c0 = arith.constant 0 : index
    %c0_0 = arith.constant 0 : index
    %c0_1 = arith.constant 0 : index
    %0 = vector.load %arg1[%c0, %c0_0, %c0_1] : memref<1x6x342xbf16, #tpu.memory_space<vmem>>, vector<1x6x288xbf16>
    %1 = vector.shape_cast %0 : vector<1x6x288xbf16> to vector<6x288xbf16>
    %2 = arith.extf %1 : vector<6x288xbf16> to vector<6x288xf32>
    %c0_2 = arith.constant 0 : index
    %c0_3 = arith.constant 0 : index
    %3 = vector.load %arg5[%c0_2, %c0_3] : memref<54x288xf32, #tpu.memory_space<vmem>>, vector<6x288xf32>
    tpu.vector_store %arg5[%c0_2, %c0_3], %2 {strides = array<i32>} : memref<54x288xf32, #tpu.memory_space<vmem>>, vector<6x288xf32>,
    %c0_4 = arith.constant 0 : index
    %c0_5 = arith.constant 0 : index
    %c1 = arith.constant 1 : index
    %4 = vector.load %arg1[%c0_4, %c0_5, %c1] : memref<1x6x342xbf16, #tpu.memory_space<vmem>>, vector<1x6x288xbf16>
    %5 = vector.shape_cast %4 : vector<1x6x288xbf16> to vector<6x288xbf16>
    %6 = arith.extf %5 : vector<6x288xbf16> to vector<6x288xf32>
    %c6 = arith.constant 6 : index
    %c0_6 = arith.constant 0 : index
    %7 = vector.load %arg5[%c6, %c0_6] : memref<54x288xf32, #tpu.memory_space<vmem>>, vector<6x288xf32>
    tpu.vector_store %arg5[%c6, %c0_6], %6 {strides = array<i32>} : memref<54x288xf32, #tpu.memory_space<vmem>>, vector<6x288xf32>,
    %c0_7 = arith.constant 0 : index
    %c0_8 = arith.constant 0 : index
    %c2 = arith.constant 2 : index
    %8 = vector.load %arg1[%c0_7, %c0_8, %c2] : memref<1x6x342xbf16, #tpu.memory_space<vmem>>, vector<1x6x288xbf16>
    %9 = vector.shape_cast %8 : vector<1x6x288xbf16> to vector<6x288xbf16>
    %10 = arith.extf %9 : vector<6x288xbf16> to vector<6x288xf32>
    %c12 = arith.constant 12 : index
    %c0_9 = arith.constant 0 : index
    %11 = vector.load %arg5[%c12, %c0_9] : memref<54x288xf32, #tpu.memory_space<vmem>>, vector<6x288xf32>
    tpu.vector_store %arg5[%c12, %c0_9], %10 {strides = array<i32>} : memref<54x288xf32, #tpu.memory_space<vmem>>, vector<6x288xf32>,
    %c0_10 = arith.constant 0 : index
    %c0_11 = arith.constant 0 : index
    %c18 = arith.constant 18 : index
    %12 = vector.load %arg1[%c0_10, %c0_11, %c18] : memref<1x6x342xbf16, #tpu.memory_space<vmem>>, vector<1x6x288xbf16>
    %13 = vector.shape_cast %12 : vector<1x6x288xbf16> to vector<6x288xbf16>
    %14 = arith.extf %13 : vector<6x288xbf16> to vector<6x288xf32>
    %c18_12 = arith.constant 18 : index
    %c0_13 = arith.constant 0 : index
    %15 = vector.load %arg5[%c18_12, %c0_13] : memref<54x288xf32, #tpu.memory_space<vmem>>, vector<6x288xf32>
    tpu.vector_store %arg5[%c18_12, %c0_13], %14 {strides = array<i32>} : memref<54x288xf32, #tpu.memory_space<vmem>>, vector<6x288xf32>,
    %c0_14 = arith.constant 0 : index
    %c0_15 = arith.constant 0 : index
    %c19 = arith.constant 19 : index
    %16 = vector.load %arg1[%c0_14, %c0_15, %c19] : memref<1x6x342xbf16, #tpu.memory_space<vmem>>, vector<1x6x288xbf16>
    %17 = vector.shape_cast %16 : vector<1x6x288xbf16> to vector<6x288xbf16>
    %18 = arith.extf %17 : vector<6x288xbf16> to vector<6x288xf32>
    %c24 = arith.constant 24 : index
    %c0_16 = arith.constant 0 : index
    %19 = vector.load %arg5[%c24, %c0_16] : memref<54x288xf32, #tpu.memory_space<vmem>>, vector<6x288xf32>
    tpu.vector_store %arg5[%c24, %c0_16], %18 {strides = array<i32>} : memref<54x288xf32, #tpu.memory_space<vmem>>, vector<6x288xf32>,
    %c0_17 = arith.constant 0 : index
    %c0_18 = arith.constant 0 : index
    %c20 = arith.constant 20 : index
    %20 = vector.load %arg1[%c0_17, %c0_18, %c20] : memref<1x6x342xbf16, #tpu.memory_space<vmem>>, vector<1x6x288xbf16>
    %21 = vector.shape_cast %20 : vector<1x6x288xbf16> to vector<6x288xbf16>
    %22 = arith.extf %21 : vector<6x288xbf16> to vector<6x288xf32>
    %c30 = arith.constant 30 : index
    %c0_19 = arith.constant 0 : index
    %23 = vector.load %arg5[%c30, %c0_19] : memref<54x288xf32, #tpu.memory_space<vmem>>, vector<6x288xf32>
    tpu.vector_store %arg5[%c30, %c0_19], %22 {strides = array<i32>} : memref<54x288xf32, #tpu.memory_space<vmem>>, vector<6x288xf32>,
    %c0_20 = arith.constant 0 : index
    %c0_21 = arith.constant 0 : index
    %c36 = arith.constant 36 : index
    %24 = vector.load %arg1[%c0_20, %c0_21, %c36] : memref<1x6x342xbf16, #tpu.memory_space<vmem>>, vector<1x6x288xbf16>
    %25 = vector.shape_cast %24 : vector<1x6x288xbf16> to vector<6x288xbf16>
    %26 = arith.extf %25 : vector<6x288xbf16> to vector<6x288xf32>
    %c36_22 = arith.constant 36 : index
    %c0_23 = arith.constant 0 : index
    %27 = vector.load %arg5[%c36_22, %c0_23] : memref<54x288xf32, #tpu.memory_space<vmem>>, vector<6x288xf32>
    tpu.vector_store %arg5[%c36_22, %c0_23], %26 {strides = array<i32>} : memref<54x288xf32, #tpu.memory_space<vmem>>, vector<6x288xf32>,
    %c0_24 = arith.constant 0 : index
    %c0_25 = arith.constant 0 : index
    %c37 = arith.constant 37 : index
    %28 = vector.load %arg1[%c0_24, %c0_25, %c37] : memref<1x6x342xbf16, #tpu.memory_space<vmem>>, vector<1x6x288xbf16>
    %29 = vector.shape_cast %28 : vector<1x6x288xbf16> to vector<6x288xbf16>
    %30 = arith.extf %29 : vector<6x288xbf16> to vector<6x288xf32>
    %c42 = arith.constant 42 : index
    %c0_26 = arith.constant 0 : index
    %31 = vector.load %arg5[%c42, %c0_26] : memref<54x288xf32, #tpu.memory_space<vmem>>, vector<6x288xf32>
    tpu.vector_store %arg5[%c42, %c0_26], %30 {strides = array<i32>} : memref<54x288xf32, #tpu.memory_space<vmem>>, vector<6x288xf32>,
    %c0_27 = arith.constant 0 : index
    %c0_28 = arith.constant 0 : index
    %c38 = arith.constant 38 : index
    %32 = vector.load %arg1[%c0_27, %c0_28, %c38] : memref<1x6x342xbf16, #tpu.memory_space<vmem>>, vector<1x6x288xbf16>
    %33 = vector.shape_cast %32 : vector<1x6x288xbf16> to vector<6x288xbf16>
    %34 = arith.extf %33 : vector<6x288xbf16> to vector<6x288xf32>
    %c48 = arith.constant 48 : index
    %c0_29 = arith.constant 0 : index
    %35 = vector.load %arg5[%c48, %c0_29] : memref<54x288xf32, #tpu.memory_space<vmem>>, vector<6x288xf32>
    tpu.vector_store %arg5[%c48, %c0_29], %34 {strides = array<i32>} : memref<54x288xf32, #tpu.memory_space<vmem>>, vector<6x288xf32>,
    %c0_30 = arith.constant 0 : index
    %c0_31 = arith.constant 0 : index
    %36 = vector.load %arg2[%c0_30, %c0_31] : memref<8x54xbf16, #tpu.memory_space<vmem>>, vector<8x54xbf16>
    %c0_32 = arith.constant 0 : index
    %c0_33 = arith.constant 0 : index
    %37 = vector.load %arg5[%c0_32, %c0_33] : memref<54x288xf32, #tpu.memory_space<vmem>>, vector<54x288xf32>
    %38 = arith.truncf %37 : vector<54x288xf32> to vector<54x288xbf16>
    %cst = arith.constant dense<0.000000e+00> : vector<8x288xf32>
    %39 = tpu.matmul %36, %38, %cst {dimension_numbers = #tpu.dot_dimension_numbers<[1], [0], [0], [1], [0, 0, 1, 1], [], []>} : vector<8x54xbf16>, vector<54x288xbf16>, vector<8x288xf32> -> vector<8x288xf32>
    %c0_34 = arith.constant 0 : index
    %c0_35 = arith.constant 0 : index
    %40 = vector.load %arg3[%c0_34, %c0_35] : memref<8x1xf32, #tpu.memory_space<vmem>>, vector<8x1xf32>
    %41 = vector.broadcast %40 : vector<8x1xf32> to vector<8x288xf32>
    %42 = arith.addf %39, %41 : vector<8x288xf32>
    %cst_36 = arith.constant 0.000000e+00 : f32
    %43 = vector.broadcast %cst_36 : f32 to vector<8x288xf32>
    %44 = arith.maximumf %42, %43 : vector<8x288xf32>
    %c0_37 = arith.constant 0 : index
    %c0_38 = arith.constant 0 : index
    %c0_39 = arith.constant 0 : index
    %45 = vector.load %arg4[%c0_37, %c0_38, %c0_39] : memref<1x8x288xf32, #tpu.memory_space<vmem>>, vector<1x8x288xf32>
    %46 = vector.shape_cast %45 : vector<1x8x288xf32> to vector<8x288xf32>
    %47 = vector.shape_cast %44 : vector<8x288xf32> to vector<1x8x288xf32>
    tpu.vector_store %arg4[%c0_37, %c0_38, %c0_39], %47 {strides = array<i32>} : memref<1x8x288xf32, #tpu.memory_space<vmem>>, vector<1x8x288xf32>,
    return
  }
  func.func @transform_0(%arg0: i32) -> (i32, i32, i32) {
    %c0_i32 = arith.constant 0 : i32
    %c0_i32_0 = arith.constant 0 : i32
    %c0_i32_1 = arith.constant 0 : i32
    return %arg0, %c0_i32, %c0_i32_0 : i32, i32, i32
  }
  func.func @transform_1(%arg0: i32) -> (i32, i32) {
    %c0_i32 = arith.constant 0 : i32
    %c0_i32_0 = arith.constant 0 : i32
    %c0_i32_1 = arith.constant 0 : i32
    return %c0_i32, %c0_i32_0 : i32, i32
  }
  func.func @transform_2(%arg0: i32) -> (i32, i32) {
    %c0_i32 = arith.constant 0 : i32
    %c0_i32_0 = arith.constant 0 : i32
    %c0_i32_1 = arith.constant 0 : i32
    return %c0_i32, %c0_i32_0 : i32, i32
  }
  func.func @transform_3(%arg0: i32) -> (i32, i32, i32) {
    %c0_i32 = arith.constant 0 : i32
    %c0_i32_0 = arith.constant 0 : i32
    %c0_i32_1 = arith.constant 0 : i32
    return %arg0, %c0_i32, %c0_i32_0 : i32, i32, i32
  }
}

</mosaic_0001>

<llo_original>
// kernel: tpu_custom_call.1
$region0: #{tpu_custom_call.1}
  #allocation0 [shape = 'u32[]', space=smem, size = 0x4, offset = 0x4, fixed_abs, tag = 'smem constant byte address 0x4 - core index']
  #allocation1 [shape = 'u32[144,128]{1,0:T(1,128)}', space=vmem, size = 0x12000, scoped, tag = 'internal scratch']
  #allocation2 [shape = 'f32[54,288]{1,0:T(8,128)}', space=vmem, size = 0x15000, scoped, tag = 'scratch operand']
  %s0 = inlined_call_operand.vmem [shape: bf16[4,6,342], index: 0, kind: input, shape index: {}]
  %s1 = inlined_call_operand.vmem [shape: bf16[8,54], index: 1, kind: input, shape index: {}]
  %s2 = inlined_call_operand.vmem [shape: f32[8,1], index: 2, kind: input, shape index: {}]
  %s3 = inlined_call_operand.hbm [shape: f32[4,8,288], index: 3, kind: output, shape index: {}]
  %s4 = sld [smem:[#allocation0]]
  $region45: #{tpu_custom_call.1} parent=0
    _
  %s6 = ssub.s32 1, %s4
  %s7 = scalar_select 0, %s6, %s4
  $region1: #{tpu_custom_call.1} parent=0
    #allocation3 [shape = 'u8[24576]{0}', space=vmem, size = 0x6000, scoped, tag = 'output window, operand 0']
    #allocation4 [shape = 's32[2]{0}', space=sflag, size = 0x8, scoped, tag = 'scoped memory for tpu_custom_call.1']
    %8 = vsyncpa [#allocation4], 0
    %s9 = scalar_lea.sflag [#allocation4], 1
    %10 = vsyncpa %s9, 0
    loop: start=0, step=1, limit=6
    $region2: #{tpu_custom_call.1} parent=1 // loop_pre_header
      _
    $region3: #{tpu_custom_call.1} parent=1 // loop_header
      %s12 = sphi 0, %s16
      %p13 = scmp.ge.s32.totalorder %s12, 6
      %s22 = sphi 0, %s24
      %s25 = sphi 0, %s22
      %s26 = sphi 0, %s25
      %s42 = sphi 0, %s26
      %s46 = sphi 0, %s46
      %s48 = sphi 0, %s46
      %s49 = sphi 0, %s48
      %s63 = sphi 0, %s49
      %s67 = sphi 0, %s67
      %s69 = sphi 0, %s67
      %s70 = sphi 0, %s69
      %s84 = sphi 0, %s70
      %s90 = sphi 0, %s92
      %s93 = sphi 0, %s90
      %s94 = sphi 0, %s93
      %s110 = sphi 0, %s94
    $region4: #{tpu_custom_call.1} parent=1 // loop_header_branch
      %15 = sbr.rel (%p13) target = $region8
    $region5: #{tpu_custom_call.1} parent=1 // loop_body
      %s17 = ssub.s32 %s12, 1
      %s18 = ssub.s32 %s12, 2
      %s19 = sadd.s32 %s12, 1
      %s20 = ssub.s32 %s12, %s19
      %p21 = scmp.eq.s32.totalorder %s20, 0
      %s23 = sadd.s32 %s22, 1
      %s24 = scalar_select %p21, %s22, %s23
      %p27 = pneg %p21
      %p28 = scmp.eq.s32.totalorder %s12, 3
      %p29 = por %p27, %p28
      %p30 = scmp.ne.s32.totalorder %s22, %s25
      %p31 = scmp.eq.s32.totalorder %s12, 0
      %p32 = por %p30, %p31
      %p33 = scmp.ne.s32.totalorder %s22, %s25
      %p34 = scmp.eq.s32.totalorder %s17, 3
      %p35 = por %p33, %p34
      %p36 = scmp.ne.s32.totalorder %s25, %s26
      %p37 = scmp.eq.s32.totalorder %s17, 0
      %p38 = por %p36, %p37
      %p39 = scmp.ne.s32.totalorder %s25, %s26
      %p40 = scmp.eq.s32.totalorder %s18, 3
      %p41 = por %p39, %p40
      %p43 = scmp.ne.s32.totalorder %s26, %s42
      %p44 = scmp.eq.s32.totalorder %s18, 0
      %p45 = por %p43, %p44
      %s47 = sadd.s32 %s46, 1
      %p50 = scmp.eq.s32.totalorder %s12, 3
      %p51 = scmp.ne.s32.totalorder %s46, %s48
      %p52 = scmp.eq.s32.totalorder %s12, 0
      %p53 = por %p51, %p52
      %p54 = scmp.ne.s32.totalorder %s46, %s48
      %p55 = scmp.eq.s32.totalorder %s17, 3
      %p56 = por %p54, %p55
      %p57 = scmp.ne.s32.totalorder %s48, %s49
      %p58 = scmp.eq.s32.totalorder %s17, 0
      %p59 = por %p57, %p58
      %p60 = scmp.ne.s32.totalorder %s48, %s49
      %p61 = scmp.eq.s32.totalorder %s18, 3
      %p62 = por %p60, %p61
      %p64 = scmp.ne.s32.totalorder %s49, %s63
      %p65 = scmp.eq.s32.totalorder %s18, 0
      %p66 = por %p64, %p65
      %s68 = sadd.s32 %s67, 1
      %p71 = scmp.eq.s32.totalorder %s12, 3
      %p72 = scmp.ne.s32.totalorder %s67, %s69
      %p73 = scmp.eq.s32.totalorder %s12, 0
      %p74 = por %p72, %p73
      %p75 = scmp.ne.s32.totalorder %s67, %s69
      %p76 = scmp.eq.s32.totalorder %s17, 3
      %p77 = por %p75, %p76
      %p78 = scmp.ne.s32.totalorder %s69, %s70
      %p79 = scmp.eq.s32.totalorder %s17, 0
      %p80 = por %p78, %p79
      %p81 = scmp.ne.s32.totalorder %s69, %s70
      %p82 = scmp.eq.s32.totalorder %s18, 3
      %p83 = por %p81, %p82
      %p85 = scmp.ne.s32.totalorder %s70, %s84
      %p86 = scmp.eq.s32.totalorder %s18, 0
      %p87 = por %p85, %p86
      %s88 = ssub.s32 %s12, %s19
      %p89 = scmp.eq.s32.totalorder %s88, 0
      %s91 = sadd.s32 %s90, 1
      %s92 = scalar_select %p89, %s90, %s91
      %p95 = pneg %p89
      %p96 = scmp.eq.s32.totalorder %s12, 3
      %p97 = por %p95, %p96
      %p98 = scmp.ne.s32.totalorder %s90, %s93
      %p99 = scmp.eq.s32.totalorder %s12, 0
      %p100 = por %p98, %p99
      %p101 = scmp.ne.s32.totalorder %s90, %s93
      %p102 = scmp.eq.s32.totalorder %s17, 3
      %p103 = por %p101, %p102
      %p104 = scmp.ne.s32.totalorder %s93, %s94
      %p105 = scmp.eq.s32.totalorder %s17, 0
      %p106 = por %p104, %p105
      %p107 = scmp.ne.s32.totalorder %s93, %s94
      %p108 = scmp.eq.s32.totalorder %s18, 3
      %p109 = por %p107, %p108
      %p111 = scmp.ne.s32.totalorder %s94, %s110
      %p112 = scmp.eq.s32.totalorder %s18, 0
      %p113 = por %p111, %p112
      %p114 = scmp.le.s32.totalorder 1, %s12
      %p115 = scmp.lt.s32.totalorder %s12, 5
      %p116 = pnand %p114, %p115
      %p117 = pneg %p116
      // Predicated region
      $region9: #{tpu_custom_call.1} parent=5 // pred_check
        _
      $region10: #{tpu_custom_call.1} parent=5 // pred_check_branch
        %119 = sbr.rel (%p116) target = $region12
      $region11: #{tpu_custom_call.1} parent=5 // pred_region
        %s120 = ssub.s32 %s12, 1
        // Predicated region
        $region13: #{tpu_custom_call.1} parent=11 // pred_check
          %p121 = pneg %p59
        $region14: #{tpu_custom_call.1} parent=11 // pred_check_branch
          %123 = sbr.rel (%p121) target = $region16
        $region15: #{tpu_custom_call.1} parent=11 // pred_region
          _
        $region16: #{tpu_custom_call.1} parent=11 // pred_fallthru
          _
        // Predicated region
        $region17: #{tpu_custom_call.1} parent=11 // pred_check
          %p124 = pneg %p80
        $region18: #{tpu_custom_call.1} parent=11 // pred_check_branch
          %126 = sbr.rel (%p124) target = $region20
        $region19: #{tpu_custom_call.1} parent=11 // pred_region
          _
        $region20: #{tpu_custom_call.1} parent=11 // pred_fallthru
          _
      $region12: #{tpu_custom_call.1} parent=5 // pred_fallthru
        _
      %p127 = scmp.lt.s32.totalorder %s12, 4
      // Predicated region
      $region21: #{tpu_custom_call.1} parent=5 // pred_check
        %p128 = pneg %p127
      $region22: #{tpu_custom_call.1} parent=5 // pred_check_branch
        %130 = sbr.rel (%p128) target = $region24
      $region23: #{tpu_custom_call.1} parent=5 // pred_region
        // Predicated region
        $region25: #{tpu_custom_call.1} parent=23 // pred_check
          %p131 = pneg %p32
        $region26: #{tpu_custom_call.1} parent=23 // pred_check_branch
          %133 = sbr.rel (%p131) target = $region28
        $region27: #{tpu_custom_call.1} parent=23 // pred_region
          %p134 = scmp.lt.s32.totalorder %s12, 3
          %s135 = scalar_select %p134, %s12, 3
          %s136 = smul.addr %s135, 3
          %s137 = smul.addr %s136, 4
          %s138 = scalar_lea.vmem %s0, %s137
        $region28: #{tpu_custom_call.1} parent=23 // pred_fallthru
          _
      $region24: #{tpu_custom_call.1} parent=5 // pred_fallthru
        _
      %p139 = scmp.le.s32.totalorder 1, %s12
      %p140 = scmp.lt.s32.totalorder %s12, 5
      %p141 = pnand %p139, %p140
      %p142 = pneg %p141
      // Predicated region
      $region29: #{tpu_custom_call.1} parent=5 // pred_check
        _
      $region30: #{tpu_custom_call.1} parent=5 // pred_check_branch
        %144 = sbr.rel (%p141) target = $region32
      $region31: #{tpu_custom_call.1} parent=5 // pred_region
        %s145 = ssub.s32 %s12, 1
        %p146 = scmp.lt.s32.totalorder %s17, 3
        %s147 = scalar_select %p146, %s17, 3
        %s148 = smul.addr %s147, 3
        %s149 = smul.addr %s148, 4
        %s150 = scalar_lea.vmem %s0, %s149
        %p151 = pneg %p38
        %p152 = pneg %p35
        %p153 = pneg %p59
        %p154 = pneg %p56
        %p155 = pneg %p80
        %p156 = pneg %p77
        %p157 = pneg %p106
        %p158 = pneg %p103
        %s159 = sand.u32 %s93, 1
        %s160 = scalar_lea.sflag [#allocation4], %s159
        %s161 = sand.u32 %s93, 1
        %s162 = smul.addr %s161, 24
        %s163 = scalar_lea.vmem [#allocation3], %s162
        %p164 = scmp.lt.s32.totalorder %s17, 3
        %s165 = scalar_select %p164, %s17, 3
        %s166 = smul.addr %s165, 3
        %s167 = smul.addr %s166, 4
        %s168 = scalar_lea.vmem %s0, %s167
        %v170 = vld [vmem:[%s168] sm:$0x77]
        %v171 = vld [vmem:[%s168 + $0x8] sm:$0x7]
        %v172 = vunpack.c.l.bf16 %v170
        %v173 = vunpack.c.h.bf16 %v170
        %v174 = vunpack.c.l.bf16 %v171
        %175 = vst [vmem:[#allocation2] sm:$0x3f] %v172
        %176 = vst [vmem:[#allocation2 + $0x8] sm:$0x3f] %v173
        %vm177 = vcmask 259072
        %178 = vst.msk [vmem:[#allocation2 + $0x10] sm:$0x3f] %vm177, %v174
        %v179 = vld [vmem:[%s168] sm:$0x77]
        %v180 = vld [vmem:[%s168 + $0x8] sm:$0x7]
        %v181 = vunpack.c.l.bf16 %v179
        %v182 = vunpack.c.h.bf16 %v179
        %v183 = vunpack.c.l.bf16 %v180
        %v187 = vrot.slane %v181, 2
        %v188 = vrot.slane %v182, 2
        %v189 = vrot.slane %v183, 2
        %190 = vrot.lane.b32.xlu0 %v187, 127
        %v191 = vpop.permute.xlu0 %190
        %192 = vrot.lane.b32.xlu0 %v188, 127
        %v193 = vpop.permute.xlu0 %192
        %194 = vrot.lane.b32.xlu0 %v189, 127
        %v195 = vpop.permute.xlu0 %194
        %vm196 = vcmask 1039360
        %v197 = vsel %vm196, %v191, %v193
        %v198 = vsel %vm196, %v193, %v195
        %202 = vst [vmem:[#allocation2] sm:$0xc0] %v197
        %203 = vst [vmem:[#allocation2 + $0x8] sm:$0xc0] %v198
        %vm204 = vcmask 261126
        %205 = vst.msk [vmem:[#allocation2 + $0x10] sm:$0xc0] %vm204, %v195
        %206 = vst [vmem:[#allocation2 + $0x18] sm:$0xf] %v197
        %207 = vst [vmem:[#allocation2 + $0x20] sm:$0xf] %v198
        %vm208 = vcmask 257024
        %209 = vst.msk [vmem:[#allocation2 + $0x28] sm:$0xf] %vm208, %v195
        %v210 = vld [vmem:[%s168] sm:$0x77]
        %v211 = vld [vmem:[%s168 + $0x8] sm:$0x7]
        %v212 = vunpack.c.l.bf16 %v210
        %v213 = vunpack.c.h.bf16 %v210
        %v214 = vunpack.c.l.bf16 %v211
        %v218 = vrot.slane %v212, 4
        %v219 = vrot.slane %v213, 4
        %v220 = vrot.slane %v214, 4
        %221 = vrot.lane.b32.xlu0 %v218, 126
        %v222 = vpop.permute.xlu0 %221
        %223 = vrot.lane.b32.xlu0 %v219, 126
        %v224 = vpop.permute.xlu0 %223
        %225 = vrot.lane.b32.xlu0 %v220, 126
        %v226 = vpop.permute.xlu0 %225
        %vm227 = vcmask 1031168
        %v228 = vsel %vm227, %v222, %v224
        %v229 = vsel %vm227, %v224, %v226
        %233 = vst [vmem:[#allocation2 + $0x18] sm:$0xf0] %v228
        %234 = vst [vmem:[#allocation2 + $0x20] sm:$0xf0] %v229
        %vm235 = vcmask 261124
        %236 = vst.msk [vmem:[#allocation2 + $0x28] sm:$0xf0] %vm235, %v226
        %237 = vst [vmem:[#allocation2 + $0x30] sm:$0x3] %v228
        %238 = vst [vmem:[#allocation2 + $0x38] sm:$0x3] %v229
        %vm239 = vcmask 254976
        %240 = vst.msk [vmem:[#allocation2 + $0x40] sm:$0x3] %vm239, %v226
        %v241 = vld [vmem:[%s168] sm:$0x77]
        %v242 = vld [vmem:[%s168 + $0x8] sm:$0x7]
        %v243 = vunpack.c.l.bf16 %v241
        %v244 = vunpack.c.h.bf16 %v241
        %v245 = vunpack.c.l.bf16 %v242
        %v249 = vrot.slane %v243, 6
        %v250 = vrot.slane %v244, 6
        %v251 = vrot.slane %v245, 6
        %252 = vrot.lane.b32.xlu0 %v249, 110
        %v253 = vpop.permute.xlu0 %252
        %254 = vrot.lane.b32.xlu0 %v250, 110
        %v255 = vpop.permute.xlu0 %254
        %256 = vrot.lane.b32.xlu0 %v251, 110
        %v257 = vpop.permute.xlu0 %256
        %vm258 = vcmask 900096
        %v259 = vsel %vm258, %v253, %v255
        %v260 = vsel %vm258, %v255, %v257
        %264 = vst [vmem:[#allocation2 + $0x30] sm:$0xfc] %v259
        %265 = vst [vmem:[#allocation2 + $0x38] sm:$0xfc] %v260
        %vm266 = vcmask 261122
        %267 = vst.msk [vmem:[#allocation2 + $0x40] sm:$0xfc] %vm266, %v257
        %v268 = vld [vmem:[%s168] sm:$0x77]
        %v269 = vld [vmem:[%s168 + $0x8] sm:$0x7]
        %v270 = vunpack.c.l.bf16 %v268
        %v271 = vunpack.c.h.bf16 %v268
        %v272 = vunpack.c.l.bf16 %v269
        %276 = vrot.lane.b32.xlu0 %v270, 109
        %v277 = vpop.permute.xlu0 %276
        %278 = vrot.lane.b32.xlu0 %v271, 109
        %v279 = vpop.permute.xlu0 %278
        %280 = vrot.lane.b32.xlu0 %v272, 109
        %v281 = vpop.permute.xlu0 %280
        %vm282 = vcmask 891904
        %v283 = vsel %vm282, %v277, %v279
        %v284 = vsel %vm282, %v279, %v281
        %288 = vst [vmem:[#allocation2 + $0x48] sm:$0x3f] %v283
        %289 = vst [vmem:[#allocation2 + $0x50] sm:$0x3f] %v284
        %290 = vst.msk [vmem:[#allocation2 + $0x58] sm:$0x3f] %vm177, %v281
        %v291 = vld [vmem:[%s168] sm:$0x77]
        %v292 = vld [vmem:[%s168 + $0x8] sm:$0x7]
        %v293 = vunpack.c.l.bf16 %v291
        %v294 = vunpack.c.h.bf16 %v291
        %v295 = vunpack.c.l.bf16 %v292
        %v299 = vrot.slane %v293, 2
        %v300 = vrot.slane %v294, 2
        %v301 = vrot.slane %v295, 2
        %302 = vrot.lane.b32.xlu0 %v299, 108
        %v303 = vpop.permute.xlu0 %302
        %304 = vrot.lane.b32.xlu0 %v300, 108
        %v305 = vpop.permute.xlu0 %304
        %306 = vrot.lane.b32.xlu0 %v301, 108
        %v307 = vpop.permute.xlu0 %306
        %vm308 = vcmask 883712
        %v309 = vsel %vm308, %v303, %v305
        %v310 = vsel %vm308, %v305, %v307
        %314 = vst [vmem:[#allocation2 + $0x48] sm:$0xc0] %v309
        %315 = vst [vmem:[#allocation2 + $0x50] sm:$0xc0] %v310
        %316 = vst.msk [vmem:[#allocation2 + $0x58] sm:$0xc0] %vm204, %v307
        %317 = vst [vmem:[#allocation2 + $0x60] sm:$0xf] %v309
        %318 = vst [vmem:[#allocation2 + $0x68] sm:$0xf] %v310
        %319 = vst.msk [vmem:[#allocation2 + $0x70] sm:$0xf] %vm208, %v307
        %v320 = vld [vmem:[%s168] sm:$0x77]
        %v321 = vld [vmem:[%s168 + $0x8] sm:$0x7]
        %v322 = vunpack.c.l.bf16 %v320
        %v323 = vunpack.c.h.bf16 %v320
        %v324 = vunpack.c.l.bf16 %v321
        %v328 = vrot.slane %v322, 4
        %v329 = vrot.slane %v323, 4
        %v330 = vrot.slane %v324, 4
        %331 = vrot.lane.b32.xlu0 %v328, 92
        %v332 = vpop.permute.xlu0 %331
        %333 = vrot.lane.b32.xlu0 %v329, 92
        %v334 = vpop.permute.xlu0 %333
        %335 = vrot.lane.b32.xlu0 %v330, 92
        %v336 = vpop.permute.xlu0 %335
        %vm337 = vcmask 752640
        %v338 = vsel %vm337, %v332, %v334
        %v339 = vsel %vm337, %v334, %v336
        %343 = vst [vmem:[#allocation2 + $0x60] sm:$0xf0] %v338
        %344 = vst [vmem:[#allocation2 + $0x68] sm:$0xf0] %v339
        %345 = vst.msk [vmem:[#allocation2 + $0x70] sm:$0xf0] %vm235, %v336
        %346 = vst [vmem:[#allocation2 + $0x78] sm:$0x3] %v338
        %347 = vst [vmem:[#allocation2 + $0x80] sm:$0x3] %v339
        %348 = vst.msk [vmem:[#allocation2 + $0x88] sm:$0x3] %vm239, %v336
        %v349 = vld [vmem:[%s168] sm:$0x77]
        %v350 = vld [vmem:[%s168 + $0x8] sm:$0x7]
        %v351 = vunpack.c.l.bf16 %v349
        %v352 = vunpack.c.h.bf16 %v349
        %v353 = vunpack.c.l.bf16 %v350
        %v357 = vrot.slane %v351, 6
        %v358 = vrot.slane %v352, 6
        %v359 = vrot.slane %v353, 6
        %360 = vrot.lane.b32.xlu0 %v357, 91
        %v361 = vpop.permute.xlu0 %360
        %362 = vrot.lane.b32.xlu0 %v358, 91
        %v363 = vpop.permute.xlu0 %362
        %364 = vrot.lane.b32.xlu0 %v359, 91
        %v365 = vpop.permute.xlu0 %364
        %vm366 = vcmask 744448
        %v367 = vsel %vm366, %v361, %v363
        %v368 = vsel %vm366, %v363, %v365
        %372 = vst [vmem:[#allocation2 + $0x78] sm:$0xfc] %v367
        %373 = vst [vmem:[#allocation2 + $0x80] sm:$0xfc] %v368
        %374 = vst.msk [vmem:[#allocation2 + $0x88] sm:$0xfc] %vm266, %v365
        %v375 = vld [vmem:[%s168] sm:$0x77]
        %v376 = vld [vmem:[%s168 + $0x8] sm:$0x7]
        %v377 = vunpack.c.l.bf16 %v375
        %v378 = vunpack.c.h.bf16 %v375
        %v379 = vunpack.c.l.bf16 %v376
        %383 = vrot.lane.b32.xlu0 %v377, 90
        %v384 = vpop.permute.xlu0 %383
        %385 = vrot.lane.b32.xlu0 %v378, 90
        %v386 = vpop.permute.xlu0 %385
        %387 = vrot.lane.b32.xlu0 %v379, 90
        %v388 = vpop.permute.xlu0 %387
        %vm389 = vcmask 736256
        %v390 = vsel %vm389, %v384, %v386
        %v391 = vsel %vm389, %v386, %v388
        %395 = vst [vmem:[#allocation2 + $0x90] sm:$0x3f] %v390
        %396 = vst [vmem:[#allocation2 + $0x98] sm:$0x3f] %v391
        %397 = vst.msk [vmem:[#allocation2 + $0xa0] sm:$0x3f] %vm177, %v388
        %v398 = vld [vmem:[%s1] sm:$0xf]
        %v399 = vld [vmem:[#allocation2] sm:$0xff]
        %v400 = vld [vmem:[#allocation2 + $0x8] sm:$0xff]
        %v401 = vld [vmem:[#allocation2 + $0x10] sm:$0xff]
        %v402 = vld [vmem:[#allocation2 + $0x18] sm:$0xff]
        %v403 = vld [vmem:[#allocation2 + $0x20] sm:$0xff]
        %v404 = vld [vmem:[#allocation2 + $0x28] sm:$0xff]
        %v405 = vld [vmem:[#allocation2 + $0x30] sm:$0xff]
        %v406 = vld [vmem:[#allocation2 + $0x38] sm:$0xff]
        %v407 = vld [vmem:[#allocation2 + $0x40] sm:$0xff]
        %v408 = vld [vmem:[#allocation2 + $0x48] sm:$0xff]
        %v409 = vld [vmem:[#allocation2 + $0x50] sm:$0xff]
        %v410 = vld [vmem:[#allocation2 + $0x58] sm:$0xff]
        %v411 = vld [vmem:[#allocation2 + $0x60] sm:$0xff]
        %v412 = vld [vmem:[#allocation2 + $0x68] sm:$0xff]
        %v413 = vld [vmem:[#allocation2 + $0x70] sm:$0xff]
        %v414 = vld [vmem:[#allocation2 + $0x78] sm:$0xff]
        %v415 = vld [vmem:[#allocation2 + $0x80] sm:$0xff]
        %v416 = vld [vmem:[#allocation2 + $0x88] sm:$0xff]
        %v417 = vld [vmem:[#allocation2 + $0x90] sm:$0x3f]
        %v418 = vld [vmem:[#allocation2 + $0x98] sm:$0x3f]
        %v419 = vld [vmem:[#allocation2 + $0xa0] sm:$0x3f]
        %v420 = vpack.c.bf16 %v402, %v399
        %v421 = vpack.c.bf16 %v403, %v400
        %v422 = vpack.c.bf16 %v404, %v401
        %v423 = vpack.c.bf16 %v408, %v405
        %v424 = vpack.c.bf16 %v409, %v406
        %v425 = vpack.c.bf16 %v410, %v407
        %v426 = vpack.c.bf16 %v414, %v411
        %v427 = vpack.c.bf16 %v415, %v412
        %v428 = vpack.c.bf16 %v416, %v413
        %v429 = vpack.c.bf16 %v417, %v417
        %v430 = vpack.c.bf16 %v418, %v418
        %v431 = vpack.c.bf16 %v419, %v419
        %v432 = vld [vmem:[%s2] sm:$0xff]
        %434 = vset.pattern.permute.xlu0 0
        %435 = vperm.xlu0 %434, %v432
        %v436 = vpop.permute.xlu0 %435
        %vm438 = vcmask 441344
        %v440 = vsel %vm438, %v398, 0
        %vm442 = vcmask 1042432
        %v444 = vsel %vm442, %v429, 0
        %v447 = vsel %vm442, %v430, 0
        %v450 = vsel %vm442, %v431, 0
        %452 = vmatprep.subr.bf16.mxu0 %v421
        %453 = vmatpush1.bf16.msra.mxu0 %v420
        %454 = vmatprep.subr.bf16.mxu0 %v424
        %455 = vmatpush1.bf16.msra.mxu0 %v423
        %456 = vmatprep.subr.bf16.mxu0 %v427
        %457 = vmatpush1.bf16.msra.mxu0 %v426
        %458 = vmatprep.subr.bf16.mxu0 %v447
        %459 = vmatpush1.bf16.msra.mxu0 %v444
        %460 = vmatprep.subr.bf16.mxu0 0
        %461 = vmatpush1.bf16.msra.mxu0 0
        %462 = vmatprep.subr.bf16.mxu0 0
        %463 = vmatpush1.bf16.msra.mxu0 0
        %464 = vmatprep.subr.bf16.mxu0 0
        %465 = vmatpush1.bf16.msra.mxu0 0
        %466 = vmatprep.subr.bf16.mxu0 0
        %467 = vmatpush1.bf16.msra.mxu0 0
        %468 = vmatprep.subr.bf16.mxu0 0
        %469 = vmatpush1.bf16.msra.mxu0 0
        %470 = vmatprep.subr.bf16.mxu0 0
        %471 = vmatpush1.bf16.msra.mxu0 0
        %472 = vmatprep.subr.bf16.mxu0 0
        %473 = vmatpush1.bf16.msra.mxu0 0
        %474 = vmatprep.subr.bf16.mxu0 0
        %475 = vmatpush1.bf16.msra.mxu0 0
        %476 = vmatprep.subr.bf16.mxu0 0
        %477 = vmatpush1.bf16.msra.mxu0 0
        %478 = vmatprep.subr.bf16.mxu0 0
        %479 = vmatpush1.bf16.msra.mxu0 0
        %480 = vmatprep.subr.bf16.mxu0 0
        %481 = vmatpush1.bf16.msra.mxu0 0
        %482 = vmatprep.subr.bf16.mxu0 0
        %483 = vmatpush1.bf16.msra.mxu0 0
        %484 = vmatprep.mubr.bf16.mxu0 0
        %485 = vmatmul.mubr.bf16.gmra.mrb[0].mxu0 %v440
        %v486 = vpop.f32.mrb[0].mxu0
        %v487 = vadd.f32 %v436, %v486
        %v488 = vpop.f32.mrb[0].mxu0
        %v489 = vadd.f32 %v436, %v488
        %v490 = vpop.f32.mrb[0].mxu0
        %v491 = vpop.f32.mrb[0].mxu0
        %492 = vdwg.mxu0
        %493 = vmatprep.subr.bf16.mxu0 0
        %494 = vmatpush1.bf16.msra.mxu0 %v422
        %495 = vmatprep.subr.bf16.mxu0 0
        %496 = vmatpush1.bf16.msra.mxu0 %v425
        %497 = vmatprep.subr.bf16.mxu0 0
        %498 = vmatpush1.bf16.msra.mxu0 %v428
        %499 = vmatprep.subr.bf16.mxu0 0
        %500 = vmatpush1.bf16.msra.mxu0 %v450
        %501 = vmatprep.subr.bf16.mxu0 0
        %502 = vmatpush1.bf16.msra.mxu0 0
        %503 = vmatprep.subr.bf16.mxu0 0
        %504 = vmatpush1.bf16.msra.mxu0 0
        %505 = vmatprep.subr.bf16.mxu0 0
        %506 = vmatpush1.bf16.msra.mxu0 0
        %507 = vmatprep.subr.bf16.mxu0 0
        %508 = vmatpush1.bf16.msra.mxu0 0
        %509 = vmatprep.subr.bf16.mxu0 0
        %510 = vmatpush1.bf16.msra.mxu0 0
        %511 = vmatprep.subr.bf16.mxu0 0
        %512 = vmatpush1.bf16.msra.mxu0 0
        %513 = vmatprep.subr.bf16.mxu0 0
        %514 = vmatpush1.bf16.msra.mxu0 0
        %515 = vmatprep.subr.bf16.mxu0 0
        %516 = vmatpush1.bf16.msra.mxu0 0
        %517 = vmatprep.subr.bf16.mxu0 0
        %518 = vmatpush1.bf16.msra.mxu0 0
        %519 = vmatprep.subr.bf16.mxu0 0
        %520 = vmatpush1.bf16.msra.mxu0 0
        %521 = vmatprep.subr.bf16.mxu0 0
        %522 = vmatpush1.bf16.msra.mxu0 0
        %523 = vmatprep.subr.bf16.mxu0 0
        %524 = vmatpush1.bf16.msra.mxu0 0
        %525 = vmatprep.mubr.bf16.mxu0 0
        %526 = vmatmul.mubr.bf16.gmra.mrb[0].mxu0 %v440
        %v527 = vpop.f32.mrb[0].mxu0
        %v528 = vadd.f32 %v436, %v527
        %v529 = vpop.f32.mrb[0].mxu0
        %v530 = vpop.f32.mrb[0].mxu0
        %v531 = vpop.f32.mrb[0].mxu0
        %532 = vdwg.mxu0
        %v533 = vmax.f32 %v487, 0.0
        %v534 = vmax.f32 %v489, 0.0
        %v535 = vmax.f32 %v528, 0.0
        %536 = vst [vmem:[%s163] sm:$0xff] %v533
        %537 = vst [vmem:[%s163 + $0x8] sm:$0xff] %v534
        %vm538 = vcmask 261120
        %539 = vst.msk [vmem:[%s163 + $0x10] sm:$0xff] %vm538, %v535
        %s540 = sand.u32 %s93, 1
        %s541 = scalar_lea.sflag [#allocation4], %s540
        %s542 = sand.u32 %s93, 1
        %s543 = smul.addr %s542, 24
        %s544 = scalar_lea.vmem [#allocation3], %s543
        // Predicated region
        $region33: #{tpu_custom_call.1} parent=31 // pred_check
          %p545 = pneg %p103
        $region34: #{tpu_custom_call.1} parent=31 // pred_check_branch
          %547 = sbr.rel (%p545) target = $region36
        $region35: #{tpu_custom_call.1} parent=31 // pred_region
          %s549 = ssub.s32 384, 384
          %550 = vsyncadd %s541, %s549
          %s551 = smul.addr %s17, 3
          %s552 = smul.addr %s551, 128
          %s553 = scalar_lea.hbm %s3, %s552
          %s555 = sshll.u32 %s544, 4
          %s556 = int_to_ptr.vmem [resolvable:$true] %s555
          %558 = dma.vmem_to_hbm [thread:$0]  %s556, 384, %s553, %s541
        $region36: #{tpu_custom_call.1} parent=31 // pred_fallthru
          _
      $region32: #{tpu_custom_call.1} parent=5 // pred_fallthru
        _
      %p559 = scmp.le.s32.totalorder 2, %s12
      // Predicated region
      $region37: #{tpu_custom_call.1} parent=5 // pred_check
        %p560 = pneg %p559
      $region38: #{tpu_custom_call.1} parent=5 // pred_check_branch
        %562 = sbr.rel (%p560) target = $region40
      $region39: #{tpu_custom_call.1} parent=5 // pred_region
        %s563 = ssub.s32 %s12, 2
        // Predicated region
        $region41: #{tpu_custom_call.1} parent=39 // pred_check
          %p564 = pneg %p109
        $region42: #{tpu_custom_call.1} parent=39 // pred_check_branch
          %566 = sbr.rel (%p564) target = $region44
        $region43: #{tpu_custom_call.1} parent=39 // pred_region
          %s567 = sand.u32 %s94, 1
          %s568 = scalar_lea.sflag [#allocation4], %s567
          %s569 = sand.u32 %s94, 1
          %s570 = smul.addr %s569, 24
          %s571 = scalar_lea.vmem [#allocation3], %s570
          %572 = dma.done %s568, 384
        $region44: #{tpu_custom_call.1} parent=39 // pred_fallthru
          _
      $region40: #{tpu_custom_call.1} parent=5 // pred_fallthru
        _
    $region6: #{tpu_custom_call.1} parent=1 // loop_footer
      %s16 = sadd.s32 1, %s12
    $region7: #{tpu_custom_call.1} parent=1 // loop_footer_branch
      %11 = sbr.rel target = $region3
    $region8: #{tpu_custom_call.1} parent=1 // loop_exit
      _
    %573 = vsyncpa [#allocation4], 1
    %s574 = scalar_lea.sflag [#allocation4], 1
    %575 = vsyncpa %s574, 1

</llo_original>
